<compile_context>
chip_gen: v7x
topology: tpu7x:2x2x1
jax: 0.10.0
libtpu: 0.0.40
codegen_flags: <defaults>
</compile_context>

<pallas_src>
import functools

import jax
import jax.numpy as jnp
from jax import lax
from jax.experimental import pallas as pl
from jax.experimental.pallas import tpu as pltpu


# ---------------------------------------------------------------------------
# helpers
# ---------------------------------------------------------------------------
def _round_up(v, m):
    return ((v + m - 1) // m) * m


def _vmem_capacity_bytes():
    """Generation-aware VMEM capacity; conservative 64 MiB (v7x per-TC) fallback."""
    try:
        info = pltpu.get_tpu_info()
        cap = int(getattr(info, "vmem_capacity_bytes", 0) or 0)
        if cap >= (16 << 20):
            return cap
    except Exception:
        pass
    return 64 << 20


# ---------------------------------------------------------------------------
# Fused single-pass kernel: whole (C, N) slice resident, grid (B,)
# ---------------------------------------------------------------------------
def _fused_kernel(x_ref, o_ref, *, eps, n_spatial):
    xd = x_ref[0]                                          # (C, N) native dtype
    x = xd.astype(jnp.float32)
    sumsq = jnp.sum(x * x, axis=0, keepdims=True)          # (1, N)
    inv_norm = lax.rsqrt(sumsq)                            # EUP
    qn = x * inv_norm                                      # Q == K normalized
    value_sum = jnp.sum(x, axis=0, keepdims=True)          # (1, N)
    q_sum = value_sum * inv_norm                           # == sum_c qn

    # matrix[c,m] = sum_n V[c,n] * Knorm[m,n]  (contract last dims -> no transpose copy)
    matrix = lax.dot_general(xd, qn.astype(xd.dtype),
                             (((1,), (1,)), ((), ())),
                             preferred_element_type=jnp.float32)      # (C, C)
    den = jnp.sum(qn * (q_sum + eps), axis=1, keepdims=True)          # (C, 1)
    tailor = pl.reciprocal(n_spatial + den)                           # exact

    matrix_sum = value_sum + jnp.dot(matrix, qn,
                                     preferred_element_type=jnp.float32)
    o_ref[0] = (matrix_sum * tailor).astype(o_ref.dtype)


# ---------------------------------------------------------------------------
# Pass 1 (tiled path): accumulate matrix (C,C) and denominator (C,1) over N tiles
# ---------------------------------------------------------------------------
def _stats_kernel(x_ref, mat_ref, den_ref, *, eps, tn, n_valid,
                  tiles_per_part, need_mask):
    t = pl.program_id(2)

    @pl.when(t == 0)
    def _init():
        mat_ref[...] = jnp.zeros_like(mat_ref)
        den_ref[...] = jnp.zeros_like(den_ref)

    xd = x_ref[0]                                          # (C, TN) native dtype
    x = xd.astype(jnp.float32)
    sumsq = jnp.sum(x * x, axis=0, keepdims=True)          # (1, TN)
    inv_norm = lax.rsqrt(sumsq)
    if need_mask:
        # zero out padded columns so they contribute nothing to the accumulators
        p = pl.program_id(1)
        col0 = (p * tiles_per_part + t) * tn
        cols = col0 + lax.broadcasted_iota(jnp.int32, (1, tn), 1)
        inv_norm = jnp.where(cols < n_valid, inv_norm, 0.0)
    qn = x * inv_norm                                      # (C, TN)
    value_sum = jnp.sum(x, axis=0, keepdims=True)          # (1, TN)
    q_sum = value_sum * inv_norm                           # (1, TN)

    mat_ref[0, 0] += lax.dot_general(xd, qn.astype(xd.dtype),
                                     (((1,), (1,)), ((), ())),
                                     preferred_element_type=jnp.float32)
    den_ref[0, 0] += jnp.sum(qn * (q_sum + eps), axis=1, keepdims=True)


# ---------------------------------------------------------------------------
# Pass 2 (tiled path): re-stream x tiles, apply matrix / tailor, write output
# ---------------------------------------------------------------------------
def _apply_kernel(x_ref, mat_ref, den_ref, o_ref, *, n_spatial):
    xd = x_ref[0]                                          # (C, TN)
    x = xd.astype(jnp.float32)
    inv_norm = lax.rsqrt(jnp.sum(x * x, axis=0, keepdims=True))
    qn = x * inv_norm
    value_sum = jnp.sum(x, axis=0, keepdims=True)

    tailor = pl.reciprocal(n_spatial + den_ref[0])         # (C, 1), exact
    matrix_sum = value_sum + jnp.dot(mat_ref[0], qn,
                                     preferred_element_type=jnp.float32)
    o_ref[0] = (matrix_sum * tailor).astype(o_ref.dtype)


# ---------------------------------------------------------------------------
# Wrapper
# ---------------------------------------------------------------------------
def shared_channel_attention(x, eps=1e-6, *,
                             single_pass_max_bytes=None,
                             tile_budget_bytes=None):
    """x: (B, C, W, H). Returns (B, C, H, W), matching the torch module's .view()."""
    b, c, w, h = x.shape
    n = w * h
    x_flat = x.reshape(b, c, n)
    itemsize = x.dtype.itemsize
    cap = _vmem_capacity_bytes()

    # ---------------- fused single-pass path (x read from HBM once) ----------------
    fused_est = (4 * c * n * itemsize          # double-buffered in + out blocks
                 + 4 * c * n * 4               # f32 working copies
                 + 2 * c * c * 4 + (2 << 20))  # matrix + slack
    fused_budget = (single_pass_max_bytes if single_pass_max_bytes is not None
                    else int(cap * 0.6))
    if fused_est <= fused_budget:
        vmem_limit = int(min(max(2 * fused_est, 16 << 20), cap - (6 << 20)))
        out_flat = pl.pallas_call(
            functools.partial(_fused_kernel, eps=eps, n_spatial=float(n)),
            out_shape=jax.ShapeDtypeStruct((b, c, n), x.dtype),
            grid_spec=pltpu.PrefetchScalarGridSpec(
                num_scalar_prefetch=0,
                grid=(b,),
                in_specs=[pl.BlockSpec((1, c, n), lambda i: (i, 0, 0))],
                out_specs=pl.BlockSpec((1, c, n), lambda i: (i, 0, 0))),
            compiler_params=pltpu.CompilerParams(
                dimension_semantics=("parallel",),
                vmem_limit_bytes=vmem_limit),
        )(x_flat)
        return out_flat.reshape(b, c, h, w)

    # ---------------- two-pass tiled path (large images) ----------------
    # Per-copy tile budget: >= 4 MiB everywhere, larger on 128 MiB-VMEM chips.
    tile_bytes = (tile_budget_bytes if tile_budget_bytes is not None
                  else max(4 << 20, cap // 16))
    budget_elems = max(tile_bytes // 4, 128 * c)
    tn = max(128, (budget_elems // c) // 128 * 128)        # lane-dense tile
    tn = min(tn, _round_up(n, 128))
    n_pad = _round_up(n, tn)                               # pad instead of old `return n`
    nt = n_pad // tn

    x_work = (jnp.pad(x_flat, ((0, 0), (0, 0), (0, n_pad - n)))
              if n_pad != n else x_flat)

    # B==1: split the N accumulation into 2 core-parallel partial accumulators.
    np_parts = 2 if (b == 1 and nt >= 2 and nt % 2 == 0) else 1
    tiles_per_part = nt // np_parts

    vmem_est = (4 * c * tn * itemsize          # double-buffered in + out tiles
                + 5 * c * tn * 4               # f32 working copies
                + 4 * (c * c + c) * 4          # matrix / denom buffers
                + (2 << 20))
    vmem_limit = int(min(max(2 * vmem_est, 16 << 20), cap - (6 << 20)))

    # -------- Pass 1: per-batch (and per-partition) (C,C) matrix + (C,1) denominator
    mat_p, den_p = pl.pallas_call(
        functools.partial(_stats_kernel, eps=eps, tn=tn, n_valid=n,
                          tiles_per_part=tiles_per_part,
                          need_mask=(n_pad != n)),
        out_shape=(jax.ShapeDtypeStruct((b, np_parts, c, c), jnp.float32),
                   jax.ShapeDtypeStruct((b, np_parts, c, 1), jnp.float32)),
        grid_spec=pltpu.PrefetchScalarGridSpec(
            num_scalar_prefetch=0,
            grid=(b, np_parts, tiles_per_part),
            in_specs=[pl.BlockSpec(
                (1, c, tn),
                lambda i, p, t, _tpp=tiles_per_part: (i, 0, p * _tpp + t))],
            out_specs=(pl.BlockSpec((1, 1, c, c), lambda i, p, t: (i, p, 0, 0)),
                       pl.BlockSpec((1, 1, c, 1), lambda i, p, t: (i, p, 0, 0)))),
        compiler_params=pltpu.CompilerParams(
            dimension_semantics=("parallel", "parallel", "arbitrary"),
            vmem_limit_bytes=vmem_limit),
    )(x_work)

    matrix = jnp.sum(mat_p, axis=1)                        # (b, c, c)
    denom = jnp.sum(den_p, axis=1)                         # (b, c, 1)

    # -------- Pass 2: apply and write output tiles (both grid axes parallel)
    out_pad = pl.pallas_call(
        functools.partial(_apply_kernel, n_spatial=float(n)),
        out_shape=jax.ShapeDtypeStruct((b, c, n_pad), x.dtype),
        grid_spec=pltpu.PrefetchScalarGridSpec(
            num_scalar_prefetch=0,
            grid=(b, nt),
            in_specs=[pl.BlockSpec((1, c, tn), lambda i, t: (i, 0, t)),
                      pl.BlockSpec((1, c, c), lambda i, t: (i, 0, 0)),
                      pl.BlockSpec((1, c, 1), lambda i, t: (i, 0, 0))],
            out_specs=pl.BlockSpec((1, c, tn), lambda i, t: (i, 0, t))),
        compiler_params=pltpu.CompilerParams(
            dimension_semantics=("parallel", "parallel"),
            vmem_limit_bytes=vmem_limit),
    )(x_work, matrix, denom)

    out_flat = out_pad[:, :, :n] if n_pad != n else out_pad
    # torch does `.view(B, C, height, width)` on the same flat buffer — reproduce.
    return out_flat.reshape(b, c, h, w)


# ---------------------------------------------------------------------------
# Pure-JAX reference (transcription of the PyTorch forward) for validation
# ---------------------------------------------------------------------------
def _reference(x, eps=1e-6):
    b, c, w, h = x.shape
    n = w * h
    v = x.reshape(b, c, n)
    norm = jnp.sqrt(jnp.sum(v * v, axis=1, keepdims=True))            # over channels
    qn = v / norm                                                     # (b, c, n)
    k = jnp.transpose(qn, (0, 2, 1))                                  # (b, n, c)
    q_sum = jnp.sum(qn, axis=1)                                       # (b, n)
    tailor = 1.0 / (n + jnp.einsum('bnc,bn->bc', k, q_sum + eps))     # (b, c)
    value_sum = jnp.sum(v, axis=1)[:, None, :]                        # (b, 1, n)
    matrix = jnp.einsum('bcn,bnm->bcm', v, k)                         # (b, c, c)
    matrix_sum = value_sum + jnp.einsum('bcm,bmn->bcn', matrix, qn)   # (b, c, n)
    wv = matrix_sum * tailor[:, :, None]
    return wv.reshape(b, c, h, w)


if __name__ == "__main__":
    # Case 1: small shape -> exercises the fused single-pass path.
    x1 = jax.random.normal(jax.random.PRNGKey(0), (2, 4, 16, 16), dtype=jnp.float32)
    out1 = jax.block_until_ready(shared_channel_attention(x1))
    ref1 = _reference(x1)
    assert out1.shape == ref1.shape == (2, 4, 16, 16)
    assert jnp.allclose(out1, ref1, atol=1e-4, rtol=1e-4), "fused path mismatch"

    # Case 2: force the tiled two-pass path with tiny budgets to also validate
    # padding/masking (N=400 not a multiple of 128), the N-tiled accumulator and
    # the B==1 core-parallel partial split.
    x2 = jax.random.normal(jax.random.PRNGKey(0), (1, 8, 16, 25), dtype=jnp.float32)
    out2 = jax.block_until_ready(
        shared_channel_attention(x2, single_pass_max_bytes=0,
                                 tile_budget_bytes=128 * 8 * 4))
    ref2 = _reference(x2)
    assert out2.shape == ref2.shape == (1, 8, 25, 16)
    assert jnp.allclose(out2, ref2, atol=1e-4, rtol=1e-4), "tiled path mismatch"

    print("KERNEL_OK")
</pallas_src>

<mosaic_0001>
module attributes {stable_mosaic.version = 11 : i64} {
  func.func @_fused_kernel(%arg0: i32, %arg1: memref<1x4x256xf32, #tpu.memory_space<vmem>>, %arg2: memref<1x4x256xf32, #tpu.memory_space<vmem>>) attributes {dimension_semantics = [#tpu.dimension_semantics<parallel>], iteration_bounds = array<i64: 2>, scalar_prefetch = 0 : i64, scratch_operands = 0 : i64, tpu.core_type = #tpu.core_type<tc>, window_params = [{transform_indices = @transform_0, window_bounds = array<i64: 1, 4, 256>}, {transform_indices = @transform_1, window_bounds = array<i64: 1, 4, 256>}]} {
    %c0 = arith.constant 0 : index
    %c0_0 = arith.constant 0 : index
    %c0_1 = arith.constant 0 : index
    %0 = vector.load %arg1[%c0, %c0_0, %c0_1] : memref<1x4x256xf32, #tpu.memory_space<vmem>>, vector<1x4x256xf32>
    %1 = vector.shape_cast %0 : vector<1x4x256xf32> to vector<4x256xf32>
    %2 = arith.mulf %1, %1 : vector<4x256xf32>
    %cst = arith.constant dense<0.000000e+00> : vector<256xf32>
    %3 = vector.multi_reduction <add>, %2, %cst [0] : vector<4x256xf32> to vector<256xf32>
    %4 = vector.shape_cast %3 : vector<256xf32> to vector<1x256xf32>
    %5 = math.rsqrt %4 : vector<1x256xf32>
    %6 = vector.broadcast %5 : vector<1x256xf32> to vector<4x256xf32>
    %7 = arith.mulf %1, %6 : vector<4x256xf32>
    %cst_2 = arith.constant dense<0.000000e+00> : vector<256xf32>
    %8 = vector.multi_reduction <add>, %1, %cst_2 [0] : vector<4x256xf32> to vector<256xf32>
    %9 = vector.shape_cast %8 : vector<256xf32> to vector<1x256xf32>
    %10 = arith.mulf %9, %5 : vector<1x256xf32>
    %cst_3 = arith.constant dense<0.000000e+00> : vector<4x4xf32>
    %11 = tpu.matmul %1, %7, %cst_3 {dimension_numbers = #tpu.dot_dimension_numbers<[1], [1], [0], [0], [0, 0, 1, 0], [], []>} : vector<4x256xf32>, vector<4x256xf32>, vector<4x4xf32> -> vector<4x4xf32>
    %cst_4 = arith.constant 9.99999997E-7 : f32
    %12 = vector.broadcast %cst_4 : f32 to vector<1x256xf32>
    %13 = arith.addf %10, %12 : vector<1x256xf32>
    %14 = vector.broadcast %13 : vector<1x256xf32> to vector<4x256xf32>
    %15 = arith.mulf %7, %14 : vector<4x256xf32>
    %cst_5 = arith.constant dense<0.000000e+00> : vector<4xf32>
    %16 = vector.multi_reduction <add>, %15, %cst_5 [1] : vector<4x256xf32> to vector<4xf32>
    %17 = vector.shape_cast %16 : vector<4xf32> to vector<4x1xf32>
    %cst_6 = arith.constant 2.560000e+02 : f32
    %18 = vector.broadcast %cst_6 : f32 to vector<4x1xf32>
    %19 = arith.addf %18, %17 : vector<4x1xf32>
    %20 = tpu.reciprocal %19 : vector<4x1xf32> -> vector<4x1xf32>
    %cst_7 = arith.constant dense<0.000000e+00> : vector<4x256xf32>
    %21 = tpu.matmul %11, %7, %cst_7 {dimension_numbers = #tpu.dot_dimension_numbers<[1], [0], [0], [1], [0, 0, 1, 1], [], []>} : vector<4x4xf32>, vector<4x256xf32>, vector<4x256xf32> -> vector<4x256xf32>
    %22 = vector.broadcast %9 : vector<1x256xf32> to vector<4x256xf32>
    %23 = arith.addf %22, %21 : vector<4x256xf32>
    %24 = vector.broadcast %20 : vector<4x1xf32> to vector<4x256xf32>
    %25 = arith.mulf %23, %24 : vector<4x256xf32>
    %c0_8 = arith.constant 0 : index
    %c0_9 = arith.constant 0 : index
    %c0_10 = arith.constant 0 : index
    %26 = vector.load %arg2[%c0_8, %c0_9, %c0_10] : memref<1x4x256xf32, #tpu.memory_space<vmem>>, vector<1x4x256xf32>
    %27 = vector.shape_cast %26 : vector<1x4x256xf32> to vector<4x256xf32>
    %28 = vector.shape_cast %25 : vector<4x256xf32> to vector<1x4x256xf32>
    tpu.vector_store %arg2[%c0_8, %c0_9, %c0_10], %28 {strides = array<i32>} : memref<1x4x256xf32, #tpu.memory_space<vmem>>, vector<1x4x256xf32>,
    return
  }
  func.func @transform_0(%arg0: i32) -> (i32, i32, i32) {
    %c0_i32 = arith.constant 0 : i32
    %c0_i32_0 = arith.constant 0 : i32
    %c0_i32_1 = arith.constant 0 : i32
    return %arg0, %c0_i32, %c0_i32_0 : i32, i32, i32
  }
  func.func @transform_1(%arg0: i32) -> (i32, i32, i32) {
    %c0_i32 = arith.constant 0 : i32
    %c0_i32_0 = arith.constant 0 : i32
    %c0_i32_1 = arith.constant 0 : i32
    return %arg0, %c0_i32, %c0_i32_0 : i32, i32, i32
  }
}

</mosaic_0001>

<llo_original>
// kernel: tpu_custom_call.1
$region0: #{tpu_custom_call.1}
  #allocation0 [shape = 'u32[]', space=smem, size = 0x4, offset = 0x4, fixed_abs, tag = 'smem constant byte address 0x4 - core index']
  #allocation1 [shape = 'u32[144,128]{1,0:T(1,128)}', space=vmem, size = 0x12000, scoped, tag = 'internal scratch']
  %s0 = inlined_call_operand.hbm [shape: f32[2,4,256], index: 0, kind: input, shape index: {}]
  %s1 = inlined_call_operand.hbm [shape: f32[2,4,256], index: 1, kind: output, shape index: {}]
  %s2 = sld [smem:[#allocation0]]
  $region41: #{tpu_custom_call.1} parent=0
    _
  %s4 = ssub.s32 1, %s2
  %s5 = scalar_select 0, %s4, %s2
  $region1: #{tpu_custom_call.1} parent=0
    #allocation2 [shape = 'u8[8192]{0}', space=vmem, size = 0x2000, scoped, tag = 'input window, operand 0']
    #allocation3 [shape = 's32[2]{0}', space=sflag, size = 0x8, scoped, tag = 'scoped memory for tpu_custom_call.1']
    #allocation4 [shape = 's32[2]{0}', space=sflag, size = 0x8, scoped, tag = 'scoped memory for tpu_custom_call.1']
    #allocation5 [shape = 'u8[8192]{0}', space=vmem, size = 0x2000, scoped, tag = 'output window, operand 0']
    %6 = vsyncpa [#allocation3], 0
    %s7 = scalar_lea.sflag [#allocation3], 1
    %8 = vsyncpa %s7, 0
    %9 = vsyncpa [#allocation4], 0
    %s10 = scalar_lea.sflag [#allocation4], 1
    %11 = vsyncpa %s10, 0
    loop: start=0, step=1, limit=4
    $region2: #{tpu_custom_call.1} parent=1 // loop_pre_header
      _
    $region3: #{tpu_custom_call.1} parent=1 // loop_header
      %s13 = sphi 0, %s17
      %p14 = scmp.ge.s32.totalorder %s13, 4
      %s23 = sphi 0, %s25
      %s26 = sphi 0, %s23
      %s27 = sphi 0, %s26
      %s43 = sphi 0, %s27
      %s49 = sphi 0, %s51
      %s52 = sphi 0, %s49
      %s53 = sphi 0, %s52
      %s69 = sphi 0, %s53
    $region4: #{tpu_custom_call.1} parent=1 // loop_header_branch
      %16 = sbr.rel (%p14) target = $region8
    $region5: #{tpu_custom_call.1} parent=1 // loop_body
      %s18 = ssub.s32 %s13, 1
      %s19 = ssub.s32 %s13, 2
      %s20 = sadd.s32 %s13, 1
      %s21 = ssub.s32 %s13, %s20
      %p22 = scmp.eq.s32.totalorder %s21, 0
      %s24 = sadd.s32 %s23, 1
      %s25 = scalar_select %p22, %s23, %s24
      %p28 = pneg %p22
      %p29 = scmp.eq.s32.totalorder %s13, 1
      %p30 = por %p28, %p29
      %p31 = scmp.ne.s32.totalorder %s23, %s26
      %p32 = scmp.eq.s32.totalorder %s13, 0
      %p33 = por %p31, %p32
      %p34 = scmp.ne.s32.totalorder %s23, %s26
      %p35 = scmp.eq.s32.totalorder %s18, 1
      %p36 = por %p34, %p35
      %p37 = scmp.ne.s32.totalorder %s26, %s27
      %p38 = scmp.eq.s32.totalorder %s18, 0
      %p39 = por %p37, %p38
      %p40 = scmp.ne.s32.totalorder %s26, %s27
      %p41 = scmp.eq.s32.totalorder %s19, 1
      %p42 = por %p40, %p41
      %p44 = scmp.ne.s32.totalorder %s27, %s43
      %p45 = scmp.eq.s32.totalorder %s19, 0
      %p46 = por %p44, %p45
      %s47 = ssub.s32 %s13, %s20
      %p48 = scmp.eq.s32.totalorder %s47, 0
      %s50 = sadd.s32 %s49, 1
      %s51 = scalar_select %p48, %s49, %s50
      %p54 = pneg %p48
      %p55 = scmp.eq.s32.totalorder %s13, 1
      %p56 = por %p54, %p55
      %p57 = scmp.ne.s32.totalorder %s49, %s52
      %p58 = scmp.eq.s32.totalorder %s13, 0
      %p59 = por %p57, %p58
      %p60 = scmp.ne.s32.totalorder %s49, %s52
      %p61 = scmp.eq.s32.totalorder %s18, 1
      %p62 = por %p60, %p61
      %p63 = scmp.ne.s32.totalorder %s52, %s53
      %p64 = scmp.eq.s32.totalorder %s18, 0
      %p65 = por %p63, %p64
      %p66 = scmp.ne.s32.totalorder %s52, %s53
      %p67 = scmp.eq.s32.totalorder %s19, 1
      %p68 = por %p66, %p67
      %p70 = scmp.ne.s32.totalorder %s53, %s69
      %p71 = scmp.eq.s32.totalorder %s19, 0
      %p72 = por %p70, %p71
      %p73 = scmp.le.s32.totalorder 1, %s13
      %p74 = scmp.lt.s32.totalorder %s13, 3
      %p75 = pnand %p73, %p74
      %p76 = pneg %p75
      // Predicated region
      $region9: #{tpu_custom_call.1} parent=5 // pred_check
        _
      $region10: #{tpu_custom_call.1} parent=5 // pred_check_branch
        %78 = sbr.rel (%p75) target = $region12
      $region11: #{tpu_custom_call.1} parent=5 // pred_region
        %s79 = ssub.s32 %s13, 1
      $region12: #{tpu_custom_call.1} parent=5 // pred_fallthru
        _
      %p80 = scmp.lt.s32.totalorder %s13, 2
      // Predicated region
      $region13: #{tpu_custom_call.1} parent=5 // pred_check
        %p81 = pneg %p80
      $region14: #{tpu_custom_call.1} parent=5 // pred_check_branch
        %83 = sbr.rel (%p81) target = $region16
      $region15: #{tpu_custom_call.1} parent=5 // pred_region
        // Predicated region
        $region17: #{tpu_custom_call.1} parent=15 // pred_check
          %p84 = pneg %p33
        $region18: #{tpu_custom_call.1} parent=15 // pred_check_branch
          %86 = sbr.rel (%p84) target = $region20
        $region19: #{tpu_custom_call.1} parent=15 // pred_region
          %s87 = sand.u32 %s23, 1
          %s88 = scalar_lea.sflag [#allocation3], %s87
          %s89 = sand.u32 %s23, 1
          %s90 = smul.addr %s89, 8
          %s91 = scalar_lea.vmem [#allocation2], %s90
          %s93 = ssub.s32 128, 128
          %94 = vsyncadd %s88, %s93
          %s95 = smul.addr %s13, 2
          %s96 = smul.addr %s95, 64
          %s97 = scalar_lea.hbm %s0, %s96
          %s99 = sshll.u32 %s91, 4
          %s100 = int_to_ptr.vmem [resolvable:$true] %s99
          %102 = dma.hbm_to_vmem [thread:$0]  %s97, 128, %s100, %s88
        $region20: #{tpu_custom_call.1} parent=15 // pred_fallthru
          _
      $region16: #{tpu_custom_call.1} parent=5 // pred_fallthru
        _
      %p103 = scmp.le.s32.totalorder 1, %s13
      %p104 = scmp.lt.s32.totalorder %s13, 3
      %p105 = pnand %p103, %p104
      %p106 = pneg %p105
      // Predicated region
      $region21: #{tpu_custom_call.1} parent=5 // pred_check
        _
      $region22: #{tpu_custom_call.1} parent=5 // pred_check_branch
        %108 = sbr.rel (%p105) target = $region24
      $region23: #{tpu_custom_call.1} parent=5 // pred_region
        %s109 = ssub.s32 %s13, 1
        %s110 = sand.u32 %s26, 1
        %s111 = scalar_lea.sflag [#allocation3], %s110
        %s112 = sand.u32 %s26, 1
        %s113 = smul.addr %s112, 8
        %s114 = scalar_lea.vmem [#allocation2], %s113
        // Predicated region
        $region25: #{tpu_custom_call.1} parent=23 // pred_check
          %p115 = pneg %p39
        $region26: #{tpu_custom_call.1} parent=23 // pred_check_branch
          %117 = sbr.rel (%p115) target = $region28
        $region27: #{tpu_custom_call.1} parent=23 // pred_region
          %118 = dma.done %s111, 128
        $region28: #{tpu_custom_call.1} parent=23 // pred_fallthru
          _
        %s119 = sand.u32 %s26, 1
        %s120 = scalar_lea.sflag [#allocation3], %s119
        %s121 = sand.u32 %s26, 1
        %s122 = smul.addr %s121, 8
        %s123 = scalar_lea.vmem [#allocation2], %s122
        %p124 = pneg %p39
        %p125 = pneg %p36
        %p126 = pneg %p65
        %p127 = pneg %p62
        %s128 = sand.u32 %s52, 1
        %s129 = scalar_lea.sflag [#allocation4], %s128
        %s130 = sand.u32 %s52, 1
        %s131 = smul.addr %s130, 8
        %s132 = scalar_lea.vmem [#allocation5], %s131
        %v133 = vld [vmem:[%s114] sm:$0xff]
        %v134 = vmul.f32 %v133, %v133
        %v136 = vcombine.high %v134, %v134
        %vm138 = vcmask 1043456
        %v139 = vsel %vm138, %v134, 0.0
        %v140 = vrot.slane %v139, 4
        %v141 = vadd.f32 %v139, %v140
        %v142 = vrot.slane %v141, 2
        %v143 = vadd.f32 %v141, %v142
        %v144 = vrot.slane %v143, 1
        %v145 = vadd.f32 %v143, %v144
        %v146 = vsel %vm138, %v136, 0.0
        %v147 = vrot.slane %v146, 4
        %v148 = vadd.f32 %v146, %v147
        %v149 = vrot.slane %v148, 2
        %v150 = vadd.f32 %v148, %v149
        %v151 = vrot.slane %v150, 1
        %v152 = vadd.f32 %v150, %v151
        %v153 = vrsqrt.pop %v145
        %v154 = vrsqrt.pop %v152
        %v157 = vcombine.low %v153, %v154
        %v159 = vmul.f32 %v133, %v157
        %v161 = vcombine.high %v133, %v133
        %v163 = vsel %vm138, %v133, 0.0
        %v164 = vrot.slane %v163, 4
        %v165 = vadd.f32 %v163, %v164
        %v166 = vrot.slane %v165, 2
        %v167 = vadd.f32 %v165, %v166
        %v168 = vrot.slane %v167, 1
        %v169 = vadd.f32 %v167, %v168
        %v170 = vsel %vm138, %v161, 0.0
        %v171 = vrot.slane %v170, 4
        %v172 = vadd.f32 %v170, %v171
        %v173 = vrot.slane %v172, 2
        %v174 = vadd.f32 %v172, %v173
        %v175 = vrot.slane %v174, 1
        %v176 = vadd.f32 %v174, %v175
        %v177 = vmul.f32 %v169, %v153
        %v178 = vmul.f32 %v176, %v154
        %v180 = vcombine.high %v159, %v159
        %182 = vmatprep.subr.mxu0 %v180
        %183 = vmatpush1.xpose.msra.mxu0 %v159
        %184 = vmatprep.subr.mxu0 0.0
        %185 = vmatpush1.xpose.msra.mxu0 0.0
        %186 = vmatprep.subr.mxu0 0.0
        %187 = vmatpush1.xpose.msra.mxu0 0.0
        %188 = vmatprep.subr.mxu0 0.0
        %189 = vmatpush1.xpose.msra.mxu0 0.0
        %190 = vmatprep.subr.mxu0 0.0
        %191 = vmatpush1.xpose.msra.mxu0 0.0
        %192 = vmatprep.subr.mxu0 0.0
        %193 = vmatpush1.xpose.msra.mxu0 0.0
        %194 = vmatprep.subr.mxu0 0.0
        %195 = vmatpush1.xpose.msra.mxu0 0.0
        %196 = vmatprep.subr.mxu0 0.0
        %197 = vmatpush1.xpose.msra.mxu0 0.0
        %198 = vmatprep.subr.mxu0 0.0
        %199 = vmatpush1.xpose.msra.mxu0 0.0
        %200 = vmatprep.subr.mxu0 0.0
        %201 = vmatpush1.xpose.msra.mxu0 0.0
        %202 = vmatprep.subr.mxu0 0.0
        %203 = vmatpush1.xpose.msra.mxu0 0.0
        %204 = vmatprep.subr.mxu0 0.0
        %205 = vmatpush1.xpose.msra.mxu0 0.0
        %206 = vmatprep.subr.mxu0 0.0
        %207 = vmatpush1.xpose.msra.mxu0 0.0
        %208 = vmatprep.subr.mxu0 0.0
        %209 = vmatpush1.xpose.msra.mxu0 0.0
        %210 = vmatprep.subr.mxu0 0.0
        %211 = vmatpush1.xpose.msra.mxu0 0.0
        %212 = vmatprep.subr.mxu0 0.0
        %213 = vmatpush1.xpose.msra.mxu0 0.0
        %214 = vmatprep.subr.mxu0 0.0
        %215 = vmatpush1.xpose.msra.mxu0 0.0
        %216 = vmatprep.subr.mxu0 0.0
        %217 = vmatpush1.xpose.msra.mxu0 0.0
        %218 = vmatprep.subr.mxu0 0.0
        %219 = vmatpush1.xpose.msra.mxu0 0.0
        %220 = vmatprep.subr.mxu0 0.0
        %221 = vmatpush1.xpose.msra.mxu0 0.0
        %222 = vmatprep.subr.mxu0 0.0
        %223 = vmatpush1.xpose.msra.mxu0 0.0
        %224 = vmatprep.subr.mxu0 0.0
        %225 = vmatpush1.xpose.msra.mxu0 0.0
        %226 = vmatprep.subr.mxu0 0.0
        %227 = vmatpush1.xpose.msra.mxu0 0.0
        %228 = vmatprep.subr.mxu0 0.0
        %229 = vmatpush1.xpose.msra.mxu0 0.0
        %230 = vmatprep.subr.mxu0 0.0
        %231 = vmatpush1.xpose.msra.mxu0 0.0
        %232 = vmatprep.subr.mxu0 0.0
        %233 = vmatpush1.xpose.msra.mxu0 0.0
        %234 = vmatprep.subr.mxu0 0.0
        %235 = vmatpush1.xpose.msra.mxu0 0.0
        %236 = vmatprep.subr.mxu0 0.0
        %237 = vmatpush1.xpose.msra.mxu0 0.0
        %238 = vmatprep.subr.mxu0 0.0
        %239 = vmatpush1.xpose.msra.mxu0 0.0
        %240 = vmatprep.subr.mxu0 0.0
        %241 = vmatpush1.xpose.msra.mxu0 0.0
        %242 = vmatprep.subr.mxu0 0.0
        %243 = vmatpush1.xpose.msra.mxu0 0.0
        %244 = vmatprep.subr.mxu0 0.0
        %245 = vmatpush1.xpose.msra.mxu0 0.0
        %246 = vmatprep.mubr.f32.mxu0 %v161
        %247 = vmatmul.mubr.f32.gmra.mrb[0].mxu0 %v133
        %v248 = vpop.f32.mrb[0].mxu0
        %v249 = vadd.f32 0.0, %v248
        %v250 = vpop.f32.mrb[0].mxu0
        %251 = vdwg.mxu0
        %v252 = vadd.f32 %v177, 1e-06
        %v253 = vadd.f32 %v178, 1e-06
        %v256 = vcombine.low %v252, %v253
        %v258 = vmul.f32 %v159, %v256
        %v260 = vcombine.high %v258, %v258
        %v262 = vsel %vm138, %v258, 0.0
        %v263 = vsel %vm138, %v260, 0.0
        %v264 = vadd.f32 %v262, %v263
        %265 = vadd.xlane.f32.xlu0 %v264
        %v266 = vpop.xlane.xlu0 %265
        %v267 = vadd.f32 %v266, 256.0
        %v268 = vrcp.pop %v267
        %vm269 = vcmask 31744
        %v271 = vsel %vm269, %v249, 0
        %v273 = vsel %vm138, %v159, 0
        %v275 = vsel %vm138, %v180, 0
        %277 = vmatprep.subr.mxu0 %v275
        %278 = vmatpush1.msra.mxu0 %v273
        %279 = vmatprep.subr.mxu0 0.0
        %280 = vmatpush1.msra.mxu0 0.0
        %281 = vmatprep.subr.mxu0 0.0
        %282 = vmatpush1.msra.mxu0 0.0
        %283 = vmatprep.subr.mxu0 0.0
        %284 = vmatpush1.msra.mxu0 0.0
        %285 = vmatprep.subr.mxu0 0.0
        %286 = vmatpush1.msra.mxu0 0.0
        %287 = vmatprep.subr.mxu0 0.0
        %288 = vmatpush1.msra.mxu0 0.0
        %289 = vmatprep.subr.mxu0 0.0
        %290 = vmatpush1.msra.mxu0 0.0
        %291 = vmatprep.subr.mxu0 0.0
        %292 = vmatpush1.msra.mxu0 0.0
        %293 = vmatprep.subr.mxu0 0.0
        %294 = vmatpush1.msra.mxu0 0.0
        %295 = vmatprep.subr.mxu0 0.0
        %296 = vmatpush1.msra.mxu0 0.0
        %297 = vmatprep.subr.mxu0 0.0
        %298 = vmatpush1.msra.mxu0 0.0
        %299 = vmatprep.subr.mxu0 0.0
        %300 = vmatpush1.msra.mxu0 0.0
        %301 = vmatprep.subr.mxu0 0.0
        %302 = vmatpush1.msra.mxu0 0.0
        %303 = vmatprep.subr.mxu0 0.0
        %304 = vmatpush1.msra.mxu0 0.0
        %305 = vmatprep.subr.mxu0 0.0
        %306 = vmatpush1.msra.mxu0 0.0
        %307 = vmatprep.subr.mxu0 0.0
        %308 = vmatpush1.msra.mxu0 0.0
        %309 = vmatprep.subr.mxu0 0.0
        %310 = vmatpush1.msra.mxu0 0.0
        %311 = vmatprep.subr.mxu0 0.0
        %312 = vmatpush1.msra.mxu0 0.0
        %313 = vmatprep.subr.mxu0 0.0
        %314 = vmatpush1.msra.mxu0 0.0
        %315 = vmatprep.subr.mxu0 0.0
        %316 = vmatpush1.msra.mxu0 0.0
        %317 = vmatprep.subr.mxu0 0.0
        %318 = vmatpush1.msra.mxu0 0.0
        %319 = vmatprep.subr.mxu0 0.0
        %320 = vmatpush1.msra.mxu0 0.0
        %321 = vmatprep.subr.mxu0 0.0
        %322 = vmatpush1.msra.mxu0 0.0
        %323 = vmatprep.subr.mxu0 0.0
        %324 = vmatpush1.msra.mxu0 0.0
        %325 = vmatprep.subr.mxu0 0.0
        %326 = vmatpush1.msra.mxu0 0.0
        %327 = vmatprep.subr.mxu0 0.0
        %328 = vmatpush1.msra.mxu0 0.0
        %329 = vmatprep.subr.mxu0 0.0
        %330 = vmatpush1.msra.mxu0 0.0
        %331 = vmatprep.subr.mxu0 0.0
        %332 = vmatpush1.msra.mxu0 0.0
        %333 = vmatprep.subr.mxu0 0.0
        %334 = vmatpush1.msra.mxu0 0.0
        %335 = vmatprep.subr.mxu0 0.0
        %336 = vmatpush1.msra.mxu0 0.0
        %337 = vmatprep.subr.mxu0 0.0
        %338 = vmatpush1.msra.mxu0 0.0
        %339 = vmatprep.subr.mxu0 0.0
        %340 = vmatpush1.msra.mxu0 0.0
        %341 = vmatprep.mubr.f32.mxu0 0.0
        %342 = vmatmul.mubr.f32.gmra.mrb[0].mxu0 %v271
        %v343 = vpop.f32.mrb[0].mxu0
        %v344 = vadd.f32 0.0, %v343
        %v345 = vpop.f32.mrb[0].mxu0
        %v346 = vadd.f32 0.0, %v345
        %347 = vdwg.mxu0
        %v348 = vadd.f32 %v169, %v344
        %v349 = vadd.f32 %v176, %v346
        %v350 = vmul.f32 %v348, %v268
        %v351 = vmul.f32 %v349, %v268
        %v354 = vcombine.low %v350, %v351
        %356 = vst [vmem:[%s132] sm:$0xff] %v354
        %s357 = sand.u32 %s52, 1
        %s358 = scalar_lea.sflag [#allocation4], %s357
        %s359 = sand.u32 %s52, 1
        %s360 = smul.addr %s359, 8
        %s361 = scalar_lea.vmem [#allocation5], %s360
        // Predicated region
        $region29: #{tpu_custom_call.1} parent=23 // pred_check
          %p362 = pneg %p62
        $region30: #{tpu_custom_call.1} parent=23 // pred_check_branch
          %364 = sbr.rel (%p362) target = $region32
        $region31: #{tpu_custom_call.1} parent=23 // pred_region
          %s366 = ssub.s32 128, 128
          %367 = vsyncadd %s358, %s366
          %s368 = smul.addr %s18, 2
          %s369 = smul.addr %s368, 64
          %s370 = scalar_lea.hbm %s1, %s369
          %s372 = sshll.u32 %s361, 4
          %s373 = int_to_ptr.vmem [resolvable:$true] %s372
          %375 = dma.vmem_to_hbm [thread:$0]  %s373, 128, %s370, %s358
        $region32: #{tpu_custom_call.1} parent=23 // pred_fallthru
          _
      $region24: #{tpu_custom_call.1} parent=5 // pred_fallthru
        _
      %p376 = scmp.le.s32.totalorder 2, %s13
      // Predicated region
      $region33: #{tpu_custom_call.1} parent=5 // pred_check
        %p377 = pneg %p376
      $region34: #{tpu_custom_call.1} parent=5 // pred_check_branch
        %379 = sbr.rel (%p377) target = $region36
      $region35: #{tpu_custom_call.1} parent=5 // pred_region
        %s380 = ssub.s32 %s13, 2
        // Predicated region
        $region37: #{tpu_custom_call.1} parent=35 // pred_check
          %p381 = pneg %p68
        $region38: #{tpu_custom_call.1} parent=35 // pred_check_branch
          %383 = sbr.rel (%p381) target = $region40
        $region39: #{tpu_custom_call.1} parent=35 // pred_region
          %s384 = sand.u32 %s53, 1
          %s385 = scalar_lea.sflag [#allocation4], %s384
          %s386 = sand.u32 %s53, 1
          %s387 = smul.addr %s386, 8
          %s388 = scalar_lea.vmem [#allocation5], %s387
          %389 = dma.done %s385, 128
        $region40: #{tpu_custom_call.1} parent=35 // pred_fallthru
          _
      $region36: #{tpu_custom_call.1} parent=5 // pred_fallthru
        _
    $region6: #{tpu_custom_call.1} parent=1 // loop_footer
      %s17 = sadd.s32 1, %s13
    $region7: #{tpu_custom_call.1} parent=1 // loop_footer_branch
      %12 = sbr.rel target = $region3
    $region8: #{tpu_custom_call.1} parent=1 // loop_exit
      _
    %390 = vsyncpa [#allocation3], 1
    %s391 = scalar_lea.sflag [#allocation3], 1
    %392 = vsyncpa %s391, 1
    %393 = vsyncpa [#allocation4], 1
    %s394 = scalar_lea.sflag [#allocation4], 1
    %395 = vsyncpa %s394, 1

</llo_original>
